<compile_context>
chip_gen: v7x
topology: tpu7x:2x2x1
jax: 0.10.0
libtpu: 0.0.40
codegen_flags: <defaults>
</compile_context>

<pallas_src>
import functools

import numpy as np
import jax
import jax.numpy as jnp
from jax import lax
from jax.experimental import pallas as pl
from jax.experimental.pallas import tpu as pltpu

TEMPERATURE = 0.05


def hardcon_loss_kernel(feat_ref, out_ref, *, batch_size, tile_m, temperature):
    B = batch_size
    TM = tile_m
    inv_t = jnp.float32(1.0 / temperature)
    i = pl.program_id(0)

    # Row tiles of the two views, sliced from the already-resident (2B, D) key block
    # (no duplicated HBM input, no extra pipeline).  Kept in the native input dtype
    # so the MXU runs bf16-native when the caller passes bf16 features.
    off1 = pl.multiple_of(i * TM, TM)
    off2 = pl.multiple_of(B + i * TM, TM)
    rhs = jnp.concatenate([feat_ref[pl.ds(off1, TM), :],
                           feat_ref[pl.ds(off2, TM), :]], axis=0)       # (2*TM, D)

    # Single MXU pass, A @ B^T form (contract the feature dim of BOTH operands, no
    # transpose materialised in the kernel source): (2B, D) x (2TM, D) -> (2B, 2TM) f32.
    # Columns are the 2*TM virtual rows handled by this program; rows are all 2B keys,
    # so the per-row reductions land lane-dense as (1, 2TM).
    dn = (((1,), (1,)), ((), ()))
    logits = lax.dot_general(feat_ref[...], rhs, dn,
                             preferred_element_type=jnp.float32) * inv_t

    # Column c < TM is virtual row g = i*TM + c; column TM + c is virtual row B + g.
    # The masked keys for both are k = g and k = B + g -> one diagonal predicate.
    r_iota = lax.broadcasted_iota(jnp.int32, (2 * B, 2 * TM), 0)
    c_iota = lax.broadcasted_iota(jnp.int32, (2 * B, 2 * TM), 1)
    r_mod = jnp.where(r_iota >= B, r_iota - B, r_iota)
    c_mod = jnp.where(c_iota >= TM, c_iota - TM, c_iota)
    is_self_or_twin = r_mod == c_mod + i * TM

    # Mask BEFORE exp: masked entries become exactly 0 (no inf*0, no cancellation).
    e = jnp.exp(jnp.where(is_self_or_twin, -jnp.inf, logits))           # (2B, 2TM)

    # Per-column (= per virtual row) negative statistics over all 2B keys.
    # (If the VPU ever becomes the binding slot these two sums can be offloaded to the
    #  now-underutilised MXU as ones(1, 2B) @ e and ones(1, 2B) @ (e*e).)
    sum_neg = jnp.sum(e, axis=0, keepdims=True)                          # (1, 2TM)
    sum_neg2 = jnp.sum(e * e, axis=0, keepdims=True)                     # (1, 2TM)

    # negimp == exp(log(neg)) == neg and every row keeps exactly 2B-2 entries, so
    # Ng = sum(neg^2) / mean(neg) = sum(neg^2) * (2B - 2) / sum(neg).
    ng = sum_neg2 * jnp.float32(2 * B - 2) / sum_neg                     # (1, 2TM)

    # Positive logit <f1_g, f2_g>/T is the masked "twin" entry of the first TM columns
    # (key row B + g); extract it lane-dense with one select + sublane sum over half
    # the block (keeps the (1, TM) layout, no transpose / relayout needed).
    rt = lax.broadcasted_iota(jnp.int32, (2 * B, TM), 0)
    ct = lax.broadcasted_iota(jnp.int32, (2 * B, TM), 1)
    is_twin = rt == ct + (B + i * TM)
    logit_pos = jnp.sum(jnp.where(is_twin, logits[:, :TM], 0.0),
                        axis=0, keepdims=True)                           # (1, TM)
    pos = jnp.exp(logit_pos)

    # Virtual rows g and B+g share pos and posmask; combining the pair:
    # -log(pos/(Ng1+pos)) - log(pos/(Ng2+pos)) == log(Ng1+pos)+log(Ng2+pos)-2*logit_pos.
    out_ref[...] = (jnp.log(ng[:, :TM] + pos) + jnp.log(ng[:, TM:] + pos)
                    - 2.0 * logit_pos)


def hardcon_loss(features_1, features_2, pairsimi, temperature=TEMPERATURE,
                 tile_m=None):
    """Returns {'instdisc_loss': scalar} matching the PyTorch HardConLoss forward."""
    B, D = features_1.shape
    assert features_2.shape == (B, D), (features_1.shape, features_2.shape)

    if tile_m is None:
        if B >= 512 and B % 256 == 0:
            tile_m = 256          # v6e/v7x-native N=512 logit blocks, >=2 row tiles
        elif B >= 256 and B % 128 == 0:
            tile_m = 128          # keeps >=2 tiles so v7x can use both TensorCores
        else:
            tile_m = B            # small batch: single tile
    assert B % tile_m == 0, (B, tile_m)
    num_tiles = B // tile_m

    # (2B, D) key block in the *native* dtype (bf16 halves HBM->VMEM traffic; the MXU
    # accumulates in f32 inside the kernel).  Pad the contraction dim to 128 lanes.
    features = jnp.concatenate([features_1, features_2], axis=0)
    if D % 128 != 0:
        features = jnp.pad(features, ((0, 0), (0, 128 - D % 128)))
    Dp = features.shape[1]

    kernel = functools.partial(hardcon_loss_kernel, batch_size=B, tile_m=tile_m,
                               temperature=temperature)

    # Footprint model: single-buffered key block + in-kernel (2*TM, Dp) rhs copy
    # + ~4 f32 (2B, 2*TM) intermediates (logits / masked / exp / e^2 + reductions).
    itemsize = jnp.dtype(features.dtype).itemsize
    est_vmem = (2 * B * Dp * itemsize
                + 2 * tile_m * Dp * itemsize
                + 4 * (2 * B) * (2 * tile_m) * 4
                + (4 << 20))
    try:
        vmem_cap = pltpu.get_tpu_info().vmem_capacity_bytes
    except Exception:   # conservative fallback (v7x-safe)
        vmem_cap = 64 * 1024 * 1024
    vmem_limit = int(min(max(est_vmem, 32 << 20), vmem_cap * 3 // 4))
    # TODO(synk): if est_vmem exceeds the cap for very large B, add an inner
    # "arbitrary" column (negative-key) grid axis with accumulated sum_neg/sum_neg2.

    per_row = pl.pallas_call(
        kernel,
        out_shape=jax.ShapeDtypeStruct((1, B), jnp.float32),
        grid=(num_tiles,),
        in_specs=[
            # Constant block index across the grid -> single buffer: halves the
            # footprint of the largest operand (matters on v7x's 64 MiB VMEM).
            pl.BlockSpec((2 * B, Dp), lambda i: (0, 0),
                         pipeline_mode=pl.Buffered(1)),
        ],
        out_specs=pl.BlockSpec((1, tile_m), lambda i: (0, i)),   # lane-dense stores
        compiler_params=pltpu.CompilerParams(
            dimension_semantics=("parallel",),
            vmem_limit_bytes=vmem_limit,
        ),
    )(features)

    # Tiny O(B) epilogue in plain XLA keeps the row-tile axis fully parallel:
    # posmask multiply + normalisation by posmask.sum() (= 2 * sum(pairsimi == 1)).
    posmask = (pairsimi == 1).astype(jnp.float32)
    loss = jnp.sum(per_row[0] * posmask) / (2.0 * jnp.sum(posmask))
    return {"instdisc_loss": loss}


def hardcon_loss_ref(f1, f2, pairsimi, temperature=TEMPERATURE):
    """NumPy reference mirroring the PyTorch forward exactly."""
    B = f1.shape[0]
    features = np.concatenate([f1, f2], axis=0)
    pos = np.exp(np.sum(f1 * f2, axis=-1) / temperature)
    pos = np.concatenate([pos, pos], axis=0)
    all_sim = features @ features.T
    mask = ~np.tile(np.eye(B, dtype=bool), (2, 2))
    neg = np.exp(all_sim / temperature)[mask].reshape(2 * B, -1)
    pairmask = np.concatenate([pairsimi, pairsimi], axis=0)
    posmask = (pairmask == 1).astype(np.float32)
    negimp = np.exp(np.log(neg))
    Ng = (negimp * neg).sum(-1) / negimp.mean(-1)
    return (-posmask * np.log(pos / (Ng + pos))).sum() / posmask.sum()


if __name__ == "__main__":
    key = jax.random.PRNGKey(0)

    # --- f32 correctness check at a small shape ---------------------------------
    B, D = 8, 32
    k1, k2 = jax.random.split(key)
    f1 = jax.random.normal(k1, (B, D), jnp.float32)
    f2 = jax.random.normal(k2, (B, D), jnp.float32)
    # L2-normalize (standard for contrastive features; keeps exp(sim/0.05) finite)
    f1 = f1 / jnp.linalg.norm(f1, axis=-1, keepdims=True)
    f2 = f2 / jnp.linalg.norm(f2, axis=-1, keepdims=True)
    pairsimi = jnp.array([1, 0, 1, 1, 0, 1, 1, 0], dtype=jnp.int32)

    losses = hardcon_loss(f1, f2, pairsimi)
    loss = jax.block_until_ready(losses["instdisc_loss"])

    ref = hardcon_loss_ref(np.asarray(f1), np.asarray(f2), np.asarray(pairsimi))
    assert np.isfinite(float(loss)), float(loss)
    assert abs(float(loss) - float(ref)) < 1e-3 * max(1.0, abs(float(ref))), \
        (float(loss), float(ref))

    # --- bf16-native MXU path smoke test (aligned shapes) -----------------------
    Bb, Db = 128, 128
    kb1, kb2 = jax.random.split(jax.random.PRNGKey(1))
    g1 = jax.random.normal(kb1, (Bb, Db), jnp.float32)
    g2 = jax.random.normal(kb2, (Bb, Db), jnp.float32)
    g1 = (g1 / jnp.linalg.norm(g1, axis=-1, keepdims=True)).astype(jnp.bfloat16)
    g2 = (g2 / jnp.linalg.norm(g2, axis=-1, keepdims=True)).astype(jnp.bfloat16)
    psim = (jnp.arange(Bb) % 2).astype(jnp.int32)
    lb = hardcon_loss(g1, g2, psim)
    jax.block_until_ready(lb["instdisc_loss"])
    assert np.isfinite(float(lb["instdisc_loss"])), float(lb["instdisc_loss"])

    print("KERNEL_OK")
</pallas_src>

<mosaic_0001>
module attributes {stable_mosaic.version = 11 : i64} {
  func.func @hardcon_loss_kernel(%arg0: i32, %arg1: memref<16x128xf32, #tpu.memory_space<vmem>>, %arg2: memref<1x8xf32, #tpu.memory_space<vmem>>) attributes {dimension_semantics = [#tpu.dimension_semantics<parallel>], iteration_bounds = array<i64: 1>, scalar_prefetch = 0 : i64, scratch_operands = 0 : i64, tpu.core_type = #tpu.core_type<tc>, window_params = [{pipeline_mode = #tpu.pipeline_mode<synchronous>, transform_indices = @transform_0, window_bounds = array<i64: 16, 128>}, {transform_indices = @transform_1, window_bounds = array<i64: 1, 8>}]} {
    %c8_i32 = arith.constant 8 : i32
    %0 = arith.muli %arg0, %c8_i32 : i32
    %1 = tpu.assume_multiple %0, 8 : i32
    %c8_i32_0 = arith.constant 8 : i32
    %2 = arith.muli %arg0, %c8_i32_0 : i32
    %c8_i32_1 = arith.constant 8 : i32
    %3 = arith.addi %c8_i32_1, %2 : i32
    %4 = tpu.assume_multiple %3, 8 : i32
    %5 = arith.index_cast %1 : i32 to index
    %c0 = arith.constant 0 : index
    %6 = vector.load %arg1[%5, %c0] : memref<16x128xf32, #tpu.memory_space<vmem>>, vector<8x128xf32>
    %7 = arith.index_cast %4 : i32 to index
    %c0_2 = arith.constant 0 : index
    %8 = vector.load %arg1[%7, %c0_2] : memref<16x128xf32, #tpu.memory_space<vmem>>, vector<8x128xf32>
    %9 = tpu.concatenate %6, %8 in 0 : vector<8x128xf32>, vector<8x128xf32> -> vector<16x128xf32>
    %c0_3 = arith.constant 0 : index
    %c0_4 = arith.constant 0 : index
    %10 = vector.load %arg1[%c0_3, %c0_4] : memref<16x128xf32, #tpu.memory_space<vmem>>, vector<16x128xf32>
    %cst = arith.constant dense<0.000000e+00> : vector<16x16xf32>
    %11 = tpu.matmul %10, %9, %cst {dimension_numbers = #tpu.dot_dimension_numbers<[1], [1], [0], [0], [0, 0, 1, 0], [], []>} : vector<16x128xf32>, vector<16x128xf32>, vector<16x16xf32> -> vector<16x16xf32>
    %cst_5 = arith.constant 2.000000e+01 : f32
    %12 = vector.broadcast %cst_5 : f32 to vector<16x16xf32>
    %13 = arith.mulf %11, %12 : vector<16x16xf32>
    %14 = tpu.iota {dimensions = array<i32: 0>} : vector<16x16xi32>
    %15 = tpu.iota {dimensions = array<i32: 1>} : vector<16x16xi32>
    %c8_i32_6 = arith.constant 8 : i32
    %16 = vector.broadcast %c8_i32_6 : i32 to vector<16x16xi32>
    %17 = arith.cmpi sge, %14, %16 : vector<16x16xi32>
    %c8_i32_7 = arith.constant 8 : i32
    %18 = vector.broadcast %c8_i32_7 : i32 to vector<16x16xi32>
    %19 = arith.subi %14, %18 : vector<16x16xi32>
    %20 = arith.select %17, %19, %14 : vector<16x16xi1>, vector<16x16xi32>
    %c8_i32_8 = arith.constant 8 : i32
    %21 = vector.broadcast %c8_i32_8 : i32 to vector<16x16xi32>
    %22 = arith.cmpi sge, %15, %21 : vector<16x16xi32>
    %c8_i32_9 = arith.constant 8 : i32
    %23 = vector.broadcast %c8_i32_9 : i32 to vector<16x16xi32>
    %24 = arith.subi %15, %23 : vector<16x16xi32>
    %25 = arith.select %22, %24, %15 : vector<16x16xi1>, vector<16x16xi32>
    %c8_i32_10 = arith.constant 8 : i32
    %26 = arith.muli %arg0, %c8_i32_10 : i32
    %27 = vector.broadcast %26 : i32 to vector<16x16xi32>
    %28 = arith.addi %25, %27 : vector<16x16xi32>
    %29 = arith.cmpi eq, %20, %28 : vector<16x16xi32>
    %cst_11 = arith.constant 0xFF800000 : f32
    %30 = vector.broadcast %cst_11 : f32 to vector<16x16xf32>
    %31 = arith.select %29, %30, %13 : vector<16x16xi1>, vector<16x16xf32>
    %32 = math.exp %31 : vector<16x16xf32>
    %cst_12 = arith.constant dense<0.000000e+00> : vector<16xf32>
    %33 = vector.multi_reduction <add>, %32, %cst_12 [0] : vector<16x16xf32> to vector<16xf32>
    %34 = vector.shape_cast %33 : vector<16xf32> to vector<1x16xf32>
    %35 = arith.mulf %32, %32 : vector<16x16xf32>
    %cst_13 = arith.constant dense<0.000000e+00> : vector<16xf32>
    %36 = vector.multi_reduction <add>, %35, %cst_13 [0] : vector<16x16xf32> to vector<16xf32>
    %37 = vector.shape_cast %36 : vector<16xf32> to vector<1x16xf32>
    %cst_14 = arith.constant 1.400000e+01 : f32
    %38 = vector.broadcast %cst_14 : f32 to vector<1x16xf32>
    %39 = arith.mulf %37, %38 : vector<1x16xf32>
    %40 = arith.divf %39, %34 : vector<1x16xf32>
    %41 = tpu.iota {dimensions = array<i32: 0>} : vector<16x8xi32>
    %42 = tpu.iota {dimensions = array<i32: 1>} : vector<16x8xi32>
    %c8_i32_15 = arith.constant 8 : i32
    %43 = arith.muli %arg0, %c8_i32_15 : i32
    %c8_i32_16 = arith.constant 8 : i32
    %44 = arith.addi %c8_i32_16, %43 : i32
    %45 = vector.broadcast %44 : i32 to vector<16x8xi32>
    %46 = arith.addi %42, %45 : vector<16x8xi32>
    %47 = arith.cmpi eq, %41, %46 : vector<16x8xi32>
    %48 = vector.extract_strided_slice %13 {offsets = [0, 0], sizes = [16, 8], strides = [1, 1]} : vector<16x16xf32> to vector<16x8xf32>
    %cst_17 = arith.constant 0.000000e+00 : f32
    %49 = vector.broadcast %cst_17 : f32 to vector<16x8xf32>
    %50 = arith.select %47, %48, %49 : vector<16x8xi1>, vector<16x8xf32>
    %cst_18 = arith.constant dense<0.000000e+00> : vector<8xf32>
    %51 = vector.multi_reduction <add>, %50, %cst_18 [0] : vector<16x8xf32> to vector<8xf32>
    %52 = vector.shape_cast %51 : vector<8xf32> to vector<1x8xf32>
    %53 = math.exp %52 : vector<1x8xf32>
    %54 = vector.extract_strided_slice %40 {offsets = [0, 0], sizes = [1, 8], strides = [1, 1]} : vector<1x16xf32> to vector<1x8xf32>
    %55 = arith.addf %54, %53 : vector<1x8xf32>
    %56 = math.log %55 : vector<1x8xf32>
    %57 = vector.extract_strided_slice %40 {offsets = [0, 8], sizes = [1, 8], strides = [1, 1]} : vector<1x16xf32> to vector<1x8xf32>
    %58 = arith.addf %57, %53 : vector<1x8xf32>
    %59 = math.log %58 : vector<1x8xf32>
    %60 = arith.addf %56, %59 : vector<1x8xf32>
    %cst_19 = arith.constant 2.000000e+00 : f32
    %61 = vector.broadcast %cst_19 : f32 to vector<1x8xf32>
    %62 = arith.mulf %61, %52 : vector<1x8xf32>
    %63 = arith.subf %60, %62 : vector<1x8xf32>
    %c0_20 = arith.constant 0 : index
    %c0_21 = arith.constant 0 : index
    %64 = vector.load %arg2[%c0_20, %c0_21] : memref<1x8xf32, #tpu.memory_space<vmem>>, vector<1x8xf32>
    tpu.vector_store %arg2[%c0_20, %c0_21], %63 {strides = array<i32>} : memref<1x8xf32, #tpu.memory_space<vmem>>, vector<1x8xf32>,
    return
  }
  func.func @transform_0(%arg0: i32) -> (i32, i32) {
    %c0_i32 = arith.constant 0 : i32
    %c0_i32_0 = arith.constant 0 : i32
    %c0_i32_1 = arith.constant 0 : i32
    return %c0_i32, %c0_i32_0 : i32, i32
  }
  func.func @transform_1(%arg0: i32) -> (i32, i32) {
    %c0_i32 = arith.constant 0 : i32
    %c0_i32_0 = arith.constant 0 : i32
    return %c0_i32, %arg0 : i32, i32
  }
}

</mosaic_0001>

<llo_original>
// kernel: tpu_custom_call.1
$region0: #{tpu_custom_call.1}
  #allocation0 [shape = 'u32[]', space=smem, size = 0x4, offset = 0x4, fixed_abs, tag = 'smem constant byte address 0x4 - core index']
  #allocation1 [shape = 'u32[144,128]{1,0:T(1,128)}', space=vmem, size = 0x12000, scoped, tag = 'internal scratch']
  %s0 = inlined_call_operand.hbm [shape: f32[16,128], index: 0, kind: input, shape index: {}]
  %s1 = inlined_call_operand.hbm [shape: f32[1,8], index: 1, kind: output, shape index: {}]
  %s2 = sld [smem:[#allocation0]]
  $region18: #{tpu_custom_call.1} parent=0
    _
  %s4 = ssub.s32 1, %s2
  %s5 = scalar_select 0, %s4, %s2
  $region1: #{tpu_custom_call.1} parent=0
    #allocation2 [shape = 'u8[8192]{0}', space=vmem, size = 0x2000, scoped, tag = 'input window, operand 0, single buffered']
    #allocation3 [shape = 's32[1]{0}', space=sflag, size = 0x4, scoped, tag = 'scoped memory for tpu_custom_call.1']
    #allocation4 [shape = 's32[1]{0}', space=sflag, size = 0x4, scoped, tag = 'scoped memory for tpu_custom_call.1']
    #allocation5 [shape = 'u8[512]{0}', space=vmem, size = 0x400, scoped, tag = 'output window, operand 0, single buffered']
    %6 = vsyncpa [#allocation3], 0
    %7 = vsyncpa [#allocation4], 0
    // Predicated region
    $region2: #{tpu_custom_call.1} parent=1 // pred_check
      _
    $region3: #{tpu_custom_call.1} parent=1 // pred_check_branch
      %9 = sbr.rel (0) target = $region5
    $region4: #{tpu_custom_call.1} parent=1 // pred_region
      %s11 = ssub.s32 256, 256
      %12 = vsyncadd [#allocation3], %s11
      %s13 = sshll.u32 [#allocation2], 4
      %s14 = int_to_ptr.vmem [resolvable:$true] %s13
      %19 = dma.hbm_to_vmem [thread:$0]  %s0, 256, %s14, [#allocation3], 128, 128, 8
    $region5: #{tpu_custom_call.1} parent=1 // pred_fallthru
      _
    // Predicated region
    $region6: #{tpu_custom_call.1} parent=1 // pred_check
      _
    $region7: #{tpu_custom_call.1} parent=1 // pred_check_branch
      %21 = sbr.rel (0) target = $region9
    $region8: #{tpu_custom_call.1} parent=1 // pred_region
      %22 = dma.done [#allocation3], 256
    $region9: #{tpu_custom_call.1} parent=1 // pred_fallthru
      _
    %s23 = smul.u32 0, 8
    %s24 = sadd.s32 %s23, 8
    %s25 = scalar_lea.vmem [#allocation2], %s23
    %v26 = vld [vmem:[%s25] sm:$0xff]
    %s27 = scalar_lea.vmem [#allocation2], %s24
    %v28 = vld [vmem:[%s27] sm:$0xff]
    %v29 = vld [vmem:[#allocation2] sm:$0xff]
    %v30 = vld [vmem:[#allocation2 + $0x8] sm:$0xff]
    %31 = vmatprep.subr.mxu0 0.0
    %32 = vmatpush1.xpose.msra.mxu0 %v26
    %33 = vmatprep.subr.mxu0 0.0
    %34 = vmatpush1.xpose.msra.mxu0 %v28
    %35 = vmatprep.subr.mxu0 0.0
    %36 = vmatpush1.xpose.msra.mxu0 0.0
    %37 = vmatprep.subr.mxu0 0.0
    %38 = vmatpush1.xpose.msra.mxu0 0.0
    %39 = vmatprep.subr.mxu0 0.0
    %40 = vmatpush1.xpose.msra.mxu0 0.0
    %41 = vmatprep.subr.mxu0 0.0
    %42 = vmatpush1.xpose.msra.mxu0 0.0
    %43 = vmatprep.subr.mxu0 0.0
    %44 = vmatpush1.xpose.msra.mxu0 0.0
    %45 = vmatprep.subr.mxu0 0.0
    %46 = vmatpush1.xpose.msra.mxu0 0.0
    %47 = vmatprep.subr.mxu0 0.0
    %48 = vmatpush1.xpose.msra.mxu0 0.0
    %49 = vmatprep.subr.mxu0 0.0
    %50 = vmatpush1.xpose.msra.mxu0 0.0
    %51 = vmatprep.subr.mxu0 0.0
    %52 = vmatpush1.xpose.msra.mxu0 0.0
    %53 = vmatprep.subr.mxu0 0.0
    %54 = vmatpush1.xpose.msra.mxu0 0.0
    %55 = vmatprep.subr.mxu0 0.0
    %56 = vmatpush1.xpose.msra.mxu0 0.0
    %57 = vmatprep.subr.mxu0 0.0
    %58 = vmatpush1.xpose.msra.mxu0 0.0
    %59 = vmatprep.subr.mxu0 0.0
    %60 = vmatpush1.xpose.msra.mxu0 0.0
    %61 = vmatprep.subr.mxu0 0.0
    %62 = vmatpush1.xpose.msra.mxu0 0.0
    %63 = vmatprep.subr.mxu0 0.0
    %64 = vmatpush1.xpose.msra.mxu0 0.0
    %65 = vmatprep.subr.mxu0 0.0
    %66 = vmatpush1.xpose.msra.mxu0 0.0
    %67 = vmatprep.subr.mxu0 0.0
    %68 = vmatpush1.xpose.msra.mxu0 0.0
    %69 = vmatprep.subr.mxu0 0.0
    %70 = vmatpush1.xpose.msra.mxu0 0.0
    %71 = vmatprep.subr.mxu0 0.0
    %72 = vmatpush1.xpose.msra.mxu0 0.0
    %73 = vmatprep.subr.mxu0 0.0
    %74 = vmatpush1.xpose.msra.mxu0 0.0
    %75 = vmatprep.subr.mxu0 0.0
    %76 = vmatpush1.xpose.msra.mxu0 0.0
    %77 = vmatprep.subr.mxu0 0.0
    %78 = vmatpush1.xpose.msra.mxu0 0.0
    %79 = vmatprep.subr.mxu0 0.0
    %80 = vmatpush1.xpose.msra.mxu0 0.0
    %81 = vmatprep.subr.mxu0 0.0
    %82 = vmatpush1.xpose.msra.mxu0 0.0
    %83 = vmatprep.subr.mxu0 0.0
    %84 = vmatpush1.xpose.msra.mxu0 0.0
    %85 = vmatprep.subr.mxu0 0.0
    %86 = vmatpush1.xpose.msra.mxu0 0.0
    %87 = vmatprep.subr.mxu0 0.0
    %88 = vmatpush1.xpose.msra.mxu0 0.0
    %89 = vmatprep.subr.mxu0 0.0
    %90 = vmatpush1.xpose.msra.mxu0 0.0
    %91 = vmatprep.subr.mxu0 0.0
    %92 = vmatpush1.xpose.msra.mxu0 0.0
    %93 = vmatprep.subr.mxu0 0.0
    %94 = vmatpush1.xpose.msra.mxu0 0.0
    %95 = vmatprep.mubr.f32.mxu0 0.0
    %96 = vmatmul.mubr.f32.gmra.mrb[0].mxu0 %v29
    %v97 = vpop.f32.mrb[0].mxu0
    %v98 = vadd.f32 0.0, %v97
    %v99 = vpop.f32.mrb[0].mxu0
    %100 = vmatprep.mubr.f32.mxu0 0.0
    %101 = vmatmul.mubr.f32.gmra.mrb[0].mxu0 %v30
    %v102 = vpop.f32.mrb[0].mxu0
    %v103 = vadd.f32 0.0, %v102
    %v104 = vpop.f32.mrb[0].mxu0
    %105 = vdwg.mxu0
    %v106 = vmul.f32 %v98, 20.0
    %v107 = vmul.f32 %v103, 20.0
    %v108 = vlaneseq
    %v109 = vshrl.u32 %v108, 7
    %v110 = vadd.s32 %v109, 8
    %v111 = vlaneseq
    %v112 = vand.u32 %v111, 127
    %vm113 = vcmp.ge.s32.totalorder %v109, 8
    %vm114 = vcmp.ge.s32.totalorder %v110, 8
    %v115 = vsub.s32 %v109, 8
    %v116 = vsel %vm113, %v115, %v109
    %v117 = vsel %vm114, %v109, %v110
    %vm118 = vcmp.ge.s32.totalorder %v112, 8
    %v119 = vsub.s32 %v112, 8
    %v120 = vsel %vm118, %v119, %v112
    %v121 = vstv %s23
    %v122 = vadd.s32 %v120, %v121
    %vm123 = vcmp.eq.s32.totalorder %v116, %v122
    %vm124 = vcmp.eq.s32.totalorder %v117, %v122
    %v125 = vsel %vm123, -inf, %v106
    %v126 = vsel %vm124, -inf, %v107
    %v127 = vmul.f32 %v125, 1.442695
    %v128 = vpow.pop %v127
    %v129 = vmul.f32 %v126, 1.442695
    %v130 = vpow.pop %v129
    %vm131 = vcmask 130048
    %v132 = vsel %vm131, %v128, 0.0
    %v133 = vsel %vm131, %v130, 0.0
    %v134 = vadd.f32 %v132, %v133
    %v135 = vrot.slane %v134, 4
    %v136 = vadd.f32 %v134, %v135
    %v137 = vrot.slane %v136, 2
    %v138 = vadd.f32 %v136, %v137
    %v139 = vrot.slane %v138, 1
    %v140 = vadd.f32 %v138, %v139
    %v141 = vmul.f32 %v128, %v128
    %v142 = vmul.f32 %v130, %v130
    %v143 = vsel %vm131, %v141, 0.0
    %v144 = vsel %vm131, %v142, 0.0
    %v145 = vadd.f32 %v143, %v144
    %v146 = vrot.slane %v145, 4
    %v147 = vadd.f32 %v145, %v146
    %v148 = vrot.slane %v147, 2
    %v149 = vadd.f32 %v147, %v148
    %v150 = vrot.slane %v149, 1
    %v151 = vadd.f32 %v149, %v150
    %v152 = vmul.f32 %v151, 14.0
    %v153 = vrcp.pop %v140
    %v154 = vmul.f32 %v152, %v153
    %v155 = vstv %s24
    %v156 = vadd.s32 %v112, %v155
    %vm157 = vcmp.eq.s32.totalorder %v109, %v156
    %vm158 = vcmp.eq.s32.totalorder %v110, %v156
    %v159 = vsel %vm157, %v106, 0.0
    %v160 = vsel %vm158, %v107, 0.0
    %vm161 = vcmask 64512
    %v162 = vsel %vm161, %v159, 0.0
    %v163 = vsel %vm161, %v160, 0.0
    %v164 = vadd.f32 %v162, %v163
    %v165 = vrot.slane %v164, 4
    %v166 = vadd.f32 %v164, %v165
    %v167 = vrot.slane %v166, 2
    %v168 = vadd.f32 %v166, %v167
    %v169 = vrot.slane %v168, 1
    %v170 = vadd.f32 %v168, %v169
    %v171 = vmul.f32 %v170, 1.442695
    %v172 = vpow.pop %v171
    %v173 = vadd.f32 %v154, %v172
    %v174 = vlog2.pop %v173
    %v175 = vmul.f32 %v174, 0.6931472
    %177 = vrot.lane.b32.xlu0 %v172, 8
    %v178 = vpop.permute.xlu0 %177
    %v180 = vadd.f32 %v154, %v178
    %v181 = vlog2.pop %v180
    %v182 = vmul.f32 %v181, 0.6931472
    %184 = vrot.lane.b32.xlu0 %v182, 120
    %v185 = vpop.permute.xlu0 %184
    %v187 = vadd.f32 %v175, %v185
    %v188 = vmul.f32 %v170, 2.0
    %v189 = vsub.f32 %v187, %v188
    %vm190 = vcmask 57344
    %191 = vst.msk [vmem:[#allocation5] sm:$0x1] %vm190, %v189
    // Predicated region
    $region10: #{tpu_custom_call.1} parent=1 // pred_check
      _
    $region11: #{tpu_custom_call.1} parent=1 // pred_check_branch
      %193 = sbr.rel (0) target = $region13
    $region12: #{tpu_custom_call.1} parent=1 // pred_region
      %s195 = ssub.s32 16, 16
      %196 = vsyncadd [#allocation4], %s195
      %s198 = sshll.u32 [#allocation5], 4
      %s199 = int_to_ptr.vmem [resolvable:$true] %s198
      %201 = dma.vmem_to_hbm [thread:$0]  %s199, 16, %s1, [#allocation4]
    $region13: #{tpu_custom_call.1} parent=1 // pred_fallthru
      _
    // Predicated region
    $region14: #{tpu_custom_call.1} parent=1 // pred_check
      _
    $region15: #{tpu_custom_call.1} parent=1 // pred_check_branch
      %203 = sbr.rel (0) target = $region17
    $region16: #{tpu_custom_call.1} parent=1 // pred_region
      %204 = dma.done [#allocation4], 16
    $region17: #{tpu_custom_call.1} parent=1 // pred_fallthru
      _
    %205 = vsyncpa [#allocation3], 1
    %206 = vsyncpa [#allocation4], 1

</llo_original>
